<compile_context>
chip_gen: v7x
topology: tpu7x:2x2x1
jax: 0.10.0
libtpu: 0.0.40
codegen_flags: <defaults>
</compile_context>

<pallas_src>
import jax
import jax.numpy as jnp
from jax.experimental import pallas as pl
from jax.experimental.pallas import tpu as pltpu


# Per-grid-step VMEM budget (bytes) used when shrinking the batch tile.
# Leaves headroom under the 32 MiB default scoped-VMEM limit that applies on
# all generations (v7x only has 64 MiB physical VMEM).
_VMEM_BUDGET = 24 << 20

# Use the fused block-diagonal path only while the (half-zero) weight slab
# stays small; past this the zero blocks waste real HBM traffic / MXU work.
_BLOCKDIAG_WEIGHT_BYTES_LIMIT = 4 << 20


def _att_head_blockdiag_kernel(x_ref, w_ref, b_ref, o_ref):
    """o = x @ W + b with W = [[Wv.T, 0], [0, Wt.T]] (block-diagonal [K, 2E])."""
    acc = jnp.dot(x_ref[...], w_ref[...], preferred_element_type=jnp.float32)
    o_ref[...] = (acc + b_ref[...].astype(jnp.float32)).astype(o_ref.dtype)


def _att_head_dual_kernel(xv_ref, xt_ref, wv_ref, wt_ref, bv_ref, bt_ref,
                          ov_ref, ot_ref):
    """Fallback for large feature sizes: two natural [M,K]@[K,N] matmuls."""
    acc_v = jnp.dot(xv_ref[...], wv_ref[...],
                    preferred_element_type=jnp.float32)
    acc_t = jnp.dot(xt_ref[...], wt_ref[...],
                    preferred_element_type=jnp.float32)
    ov_ref[...] = (acc_v + bv_ref[...].astype(jnp.float32)).astype(ov_ref.dtype)
    ot_ref[...] = (acc_t + bt_ref[...].astype(jnp.float32)).astype(ot_ref.dtype)


def _pick_batch_tile(B, per_row_bytes, fixed_bytes):
    """Batch tile: <= 256 rows, halved (staying a multiple of 8) to fit VMEM.

    per_row_bytes: double-buffered streaming bytes per batch row (in + out).
    fixed_bytes:   grid-invariant bytes (single-buffered weights / bias).
    """
    if B <= 256:
        return B   # single full-extent block is always layout-legal
    tb = 256
    while tb > 8 and fixed_bytes + tb * per_row_bytes > _VMEM_BUDGET:
        tb //= 2
    return tb


def att_head_fused(visual_feature, textual_feature, w_v, b_v, w_t, b_t):
    """Fused AttHead eval forward.

    visual_feature:  [B, Dv]
    textual_feature: [B, Dt]
    w_v: [E, Dv], b_v: [E]   (PyTorch nn.Linear layout)
    w_t: [E, Dt], b_t: [E]
    Returns (visual_embed [B, E], textual_embed [B, E]).
    """
    B, Dv = visual_feature.shape
    Bt, Dt = textual_feature.shape
    assert B == Bt, "visual/textual batch mismatch"
    E = w_v.shape[0]
    assert w_t.shape[0] == E
    dtype = visual_feature.dtype
    itemsize = jnp.dtype(dtype).itemsize

    use_blockdiag = (Dv + Dt) * (2 * E) * itemsize <= _BLOCKDIAG_WEIGHT_BYTES_LIMIT

    if use_blockdiag:
        # ---- Fast path: one matmul, 3 operands, lane-dense 2E output. ----
        Din = Dv + Dt
        # Pre-transposed, block-diagonal [K, N] weight (tiny one-time XLA op).
        w = jnp.concatenate([
            jnp.concatenate([w_v.T, jnp.zeros((Dv, E), dtype)], axis=1),
            jnp.concatenate([jnp.zeros((Dt, E), dtype), w_t.T], axis=1),
        ], axis=0)                                            # [Din, 2E]
        b = jnp.concatenate([b_v, b_t]).reshape(1, 2 * E)     # [1, 2E]
        x = jnp.concatenate([visual_feature, textual_feature], axis=-1)

        per_row = itemsize * 2 * (Din + 2 * E)    # 2x-buffered in-row + out-row
        fixed = itemsize * (w.size + b.size)      # single-buffered invariants
        tb = _pick_batch_tile(B, per_row, fixed)
        grid = (pl.cdiv(B, tb),)

        cost = pl.CostEstimate(
            flops=2 * B * Din * 2 * E, transcendentals=0,
            bytes_accessed=itemsize * (x.size + w.size + b.size + B * 2 * E))

        out = pl.pallas_call(
            _att_head_blockdiag_kernel,
            out_shape=jax.ShapeDtypeStruct((B, 2 * E), dtype),
            grid=grid,
            in_specs=[
                pl.BlockSpec((tb, Din), lambda i: (i, 0)),
                pl.BlockSpec((Din, 2 * E), lambda i: (0, 0),
                             pipeline_mode=pl.Buffered(1)),
                pl.BlockSpec((1, 2 * E), lambda i: (0, 0),
                             pipeline_mode=pl.Buffered(1)),
            ],
            out_specs=pl.BlockSpec((tb, 2 * E), lambda i: (i, 0)),
            compiler_params=pltpu.CompilerParams(
                dimension_semantics=("parallel",)),
            cost_estimate=cost,
        )(x, w, b)
        return out[:, :E], out[:, E:]

    # ---- Fallback: large feature sizes (no zero-block waste). -----------
    wv_t = w_v.T                     # [Dv, E] — natural MXU feed
    wt_t = w_t.T                     # [Dt, E]
    bv2 = b_v.reshape(1, E)
    bt2 = b_t.reshape(1, E)

    per_row = itemsize * 2 * (Dv + Dt + 2 * E)
    fixed = itemsize * (wv_t.size + wt_t.size + bv2.size + bt2.size)
    # TODO(synk): if the weights alone exceed the VMEM budget, add K/N tiling
    # (extra grid axes); not needed for this module's typical sizes.
    tb = _pick_batch_tile(B, per_row, fixed)
    grid = (pl.cdiv(B, tb),)

    cost = pl.CostEstimate(
        flops=2 * B * (Dv + Dt) * E, transcendentals=0,
        bytes_accessed=itemsize * (visual_feature.size + textual_feature.size
                                   + wv_t.size + wt_t.size + 2 * E + 2 * B * E))

    invariant = pl.Buffered(1)
    ov, ot = pl.pallas_call(
        _att_head_dual_kernel,
        out_shape=(jax.ShapeDtypeStruct((B, E), dtype),
                   jax.ShapeDtypeStruct((B, E), dtype)),
        grid=grid,
        in_specs=[
            pl.BlockSpec((tb, Dv), lambda i: (i, 0)),
            pl.BlockSpec((tb, Dt), lambda i: (i, 0)),
            pl.BlockSpec((Dv, E), lambda i: (0, 0), pipeline_mode=invariant),
            pl.BlockSpec((Dt, E), lambda i: (0, 0), pipeline_mode=invariant),
            pl.BlockSpec((1, E), lambda i: (0, 0), pipeline_mode=invariant),
            pl.BlockSpec((1, E), lambda i: (0, 0), pipeline_mode=invariant),
        ],
        out_specs=(pl.BlockSpec((tb, E), lambda i: (i, 0)),
                   pl.BlockSpec((tb, E), lambda i: (i, 0))),
        compiler_params=pltpu.CompilerParams(
            dimension_semantics=("parallel",)),
        cost_estimate=cost,
    )(visual_feature, textual_feature, wv_t, wt_t, bv2, bt2)
    return ov, ot


def init_att_head_params(key, visual_size, textual_size, embed_size,
                         dtype=jnp.float32):
    """Deterministic re-implementation of AttHead._init_weight().

    kaiming_normal_(a=0, mode='fan_out') on nn.Linear weight [out, in]:
      std = sqrt(2 / fan_out) = sqrt(2 / out_features); bias = 0.
    """
    kv, kt = jax.random.split(key)
    std = (2.0 / embed_size) ** 0.5
    w_v = std * jax.random.normal(kv, (embed_size, visual_size), dtype)
    w_t = std * jax.random.normal(kt, (embed_size, textual_size), dtype)
    b_v = jnp.zeros((embed_size,), dtype)
    b_t = jnp.zeros((embed_size,), dtype)
    return {"w_visual": w_v, "b_visual": b_v,
            "w_textual": w_t, "b_textual": b_t}


@jax.jit
def att_head_forward(params, visual_feature, textual_feature):
    """Eval-mode AttHead.forward: returns (visual_embed, textual_embed)."""
    # TODO(synk): training-branch loss_evaluator (make_loss_evaluator(cfg))
    # is external to this module's definition and is not reproduced here.
    return att_head_fused(
        visual_feature, textual_feature,
        params["w_visual"], params["b_visual"],
        params["w_textual"], params["b_textual"])


if __name__ == "__main__":
    key = jax.random.PRNGKey(0)
    k_params, k_vis, k_txt = jax.random.split(key, 3)

    batch = 2
    visual_size = 32
    textual_size = 48
    embed_size = 64

    params = init_att_head_params(
        k_params, visual_size, textual_size, embed_size)

    visual_feature = jax.random.normal(
        k_vis, (batch, visual_size), jnp.float32)
    textual_feature = jax.random.normal(
        k_txt, (batch, textual_size), jnp.float32)

    visual_embed, textual_embed = att_head_forward(
        params, visual_feature, textual_feature)
    jax.block_until_ready((visual_embed, textual_embed))

    # Reference check against plain JAX (same math as nn.Linear).
    ref_v = visual_feature @ params["w_visual"].T + params["b_visual"]
    ref_t = textual_feature @ params["w_textual"].T + params["b_textual"]
    assert visual_embed.shape == (batch, embed_size)
    assert textual_embed.shape == (batch, embed_size)
    assert jnp.allclose(visual_embed, ref_v, atol=1e-5, rtol=1e-5)
    assert jnp.allclose(textual_embed, ref_t, atol=1e-5, rtol=1e-5)

    print("KERNEL_OK")
</pallas_src>

<mosaic_0001>
module attributes {stable_mosaic.version = 11 : i64} {
  func.func @_att_head_blockdiag_kernel(%arg0: i32, %arg1: memref<2x80xf32, #tpu.memory_space<vmem>>, %arg2: memref<80x128xf32, #tpu.memory_space<vmem>>, %arg3: memref<1x128xf32, #tpu.memory_space<vmem>>, %arg4: memref<2x128xf32, #tpu.memory_space<vmem>>) attributes {dimension_semantics = [#tpu.dimension_semantics<parallel>], iteration_bounds = array<i64: 1>, scalar_prefetch = 0 : i64, scratch_operands = 0 : i64, tpu.core_type = #tpu.core_type<tc>, window_params = [{transform_indices = @transform_0, window_bounds = array<i64: 2, 80>}, {pipeline_mode = #tpu.pipeline_mode<synchronous>, transform_indices = @transform_1, window_bounds = array<i64: 80, 128>}, {pipeline_mode = #tpu.pipeline_mode<synchronous>, transform_indices = @transform_2, window_bounds = array<i64: 1, 128>}, {transform_indices = @transform_3, window_bounds = array<i64: 2, 128>}]} {
    %c0 = arith.constant 0 : index
    %c0_0 = arith.constant 0 : index
    %0 = vector.load %arg1[%c0, %c0_0] : memref<2x80xf32, #tpu.memory_space<vmem>>, vector<2x80xf32>
    %c0_1 = arith.constant 0 : index
    %c0_2 = arith.constant 0 : index
    %1 = vector.load %arg2[%c0_1, %c0_2] : memref<80x128xf32, #tpu.memory_space<vmem>>, vector<80x128xf32>
    %cst = arith.constant dense<0.000000e+00> : vector<2x128xf32>
    %2 = tpu.matmul %0, %1, %cst {dimension_numbers = #tpu.dot_dimension_numbers<[1], [0], [0], [1], [0, 0, 1, 1], [], []>} : vector<2x80xf32>, vector<80x128xf32>, vector<2x128xf32> -> vector<2x128xf32>
    %c0_3 = arith.constant 0 : index
    %c0_4 = arith.constant 0 : index
    %3 = vector.load %arg3[%c0_3, %c0_4] : memref<1x128xf32, #tpu.memory_space<vmem>>, vector<1x128xf32>
    %4 = vector.broadcast %3 : vector<1x128xf32> to vector<2x128xf32>
    %5 = arith.addf %2, %4 : vector<2x128xf32>
    %c0_5 = arith.constant 0 : index
    %c0_6 = arith.constant 0 : index
    %6 = vector.load %arg4[%c0_5, %c0_6] : memref<2x128xf32, #tpu.memory_space<vmem>>, vector<2x128xf32>
    tpu.vector_store %arg4[%c0_5, %c0_6], %5 {strides = array<i32>} : memref<2x128xf32, #tpu.memory_space<vmem>>, vector<2x128xf32>,
    return
  }
  func.func @transform_0(%arg0: i32) -> (i32, i32) {
    %c0_i32 = arith.constant 0 : i32
    %c0_i32_0 = arith.constant 0 : i32
    return %arg0, %c0_i32 : i32, i32
  }
  func.func @transform_1(%arg0: i32) -> (i32, i32) {
    %c0_i32 = arith.constant 0 : i32
    %c0_i32_0 = arith.constant 0 : i32
    %c0_i32_1 = arith.constant 0 : i32
    return %c0_i32, %c0_i32_0 : i32, i32
  }
  func.func @transform_2(%arg0: i32) -> (i32, i32) {
    %c0_i32 = arith.constant 0 : i32
    %c0_i32_0 = arith.constant 0 : i32
    %c0_i32_1 = arith.constant 0 : i32
    return %c0_i32, %c0_i32_0 : i32, i32
  }
  func.func @transform_3(%arg0: i32) -> (i32, i32) {
    %c0_i32 = arith.constant 0 : i32
    %c0_i32_0 = arith.constant 0 : i32
    return %arg0, %c0_i32 : i32, i32
  }
}

</mosaic_0001>

<llo_original>
// kernel: att_head_forward.1
$region0: #{att_head_forward.1}
  #allocation0 [shape = 'u32[]', space=smem, size = 0x4, offset = 0x4, fixed_abs, tag = 'smem constant byte address 0x4 - core index']
  #allocation1 [shape = 'u32[144,128]{1,0:T(1,128)}', space=vmem, size = 0x12000, scoped, tag = 'internal scratch']
  %s0 = inlined_call_operand.vmem [shape: f32[2,80], index: 0, kind: input, shape index: {}]
  %s1 = inlined_call_operand.vmem [shape: f32[80,128], index: 1, kind: input, shape index: {}]
  %s2 = inlined_call_operand.vmem [shape: f32[1,128], index: 2, kind: input, shape index: {}]
  %s3 = inlined_call_operand.vmem [shape: f32[2,128], index: 3, kind: output, shape index: {}]
  %s4 = sld [smem:[#allocation0]]
  $region22: #{att_head_forward.1} parent=0
    _
  %s6 = ssub.s32 1, %s4
  %s7 = scalar_select 0, %s6, %s4
  // Predicated region
  $region2: #{att_head_forward.1} parent=0 // pred_check
    _
  $region3: #{att_head_forward.1} parent=0 // pred_check_branch
    %9 = sbr.rel (0) target = $region5
  $region4: #{att_head_forward.1} parent=0 // pred_region
    _
  $region5: #{att_head_forward.1} parent=0 // pred_fallthru
    _
  // Predicated region
  $region6: #{att_head_forward.1} parent=0 // pred_check
    _
  $region7: #{att_head_forward.1} parent=0 // pred_check_branch
    %11 = sbr.rel (0) target = $region9
  $region8: #{att_head_forward.1} parent=0 // pred_region
    _
  $region9: #{att_head_forward.1} parent=0 // pred_fallthru
    _
  // Predicated region
  $region10: #{att_head_forward.1} parent=0 // pred_check
    _
  $region11: #{att_head_forward.1} parent=0 // pred_check_branch
    %13 = sbr.rel (0) target = $region13
  $region12: #{att_head_forward.1} parent=0 // pred_region
    _
  $region13: #{att_head_forward.1} parent=0 // pred_fallthru
    _
  %v14 = vld [vmem:[%s0] sm:$0x3]
  %v15 = vld [vmem:[%s1] sm:$0xff]
  %v16 = vld [vmem:[%s1 + $0x8] sm:$0xff]
  %v17 = vld [vmem:[%s1 + $0x10] sm:$0xff]
  %v18 = vld [vmem:[%s1 + $0x18] sm:$0xff]
  %v19 = vld [vmem:[%s1 + $0x20] sm:$0xff]
  %v20 = vld [vmem:[%s1 + $0x28] sm:$0xff]
  %v21 = vld [vmem:[%s1 + $0x30] sm:$0xff]
  %v22 = vld [vmem:[%s1 + $0x38] sm:$0xff]
  %v23 = vld [vmem:[%s1 + $0x40] sm:$0xff]
  %v24 = vld [vmem:[%s1 + $0x48] sm:$0xff]
  %v25 = vld [vmem:[%s2] sm:$0x1]
  %v27 = vlaneseq
  %v28 = vshrl.u32 %v27, 7
  %v29 = vsub.s32 0, %v28
  %v30 = vrot.slane %v25, %v29
  %vm32 = vcmask 654336
  %v34 = vsel %vm32, %v14, 0
  %36 = vmatprep.subr.mxu0 0.0
  %37 = vmatpush1.msra.mxu0 %v15
  %38 = vmatprep.subr.mxu0 0.0
  %39 = vmatpush1.msra.mxu0 %v16
  %40 = vmatprep.subr.mxu0 0.0
  %41 = vmatpush1.msra.mxu0 %v17
  %42 = vmatprep.subr.mxu0 0.0
  %43 = vmatpush1.msra.mxu0 %v18
  %44 = vmatprep.subr.mxu0 0.0
  %45 = vmatpush1.msra.mxu0 %v19
  %46 = vmatprep.subr.mxu0 0.0
  %47 = vmatpush1.msra.mxu0 %v20
  %48 = vmatprep.subr.mxu0 0.0
  %49 = vmatpush1.msra.mxu0 %v21
  %50 = vmatprep.subr.mxu0 0.0
  %51 = vmatpush1.msra.mxu0 %v22
  %52 = vmatprep.subr.mxu0 0.0
  %53 = vmatpush1.msra.mxu0 %v23
  %54 = vmatprep.subr.mxu0 0.0
  %55 = vmatpush1.msra.mxu0 %v24
  %56 = vmatprep.subr.mxu0 0.0
  %57 = vmatpush1.msra.mxu0 0.0
  %58 = vmatprep.subr.mxu0 0.0
  %59 = vmatpush1.msra.mxu0 0.0
  %60 = vmatprep.subr.mxu0 0.0
  %61 = vmatpush1.msra.mxu0 0.0
  %62 = vmatprep.subr.mxu0 0.0
  %63 = vmatpush1.msra.mxu0 0.0
  %64 = vmatprep.subr.mxu0 0.0
  %65 = vmatpush1.msra.mxu0 0.0
  %66 = vmatprep.subr.mxu0 0.0
  %67 = vmatpush1.msra.mxu0 0.0
  %68 = vmatprep.subr.mxu0 0.0
  %69 = vmatpush1.msra.mxu0 0.0
  %70 = vmatprep.subr.mxu0 0.0
  %71 = vmatpush1.msra.mxu0 0.0
  %72 = vmatprep.subr.mxu0 0.0
  %73 = vmatpush1.msra.mxu0 0.0
  %74 = vmatprep.subr.mxu0 0.0
  %75 = vmatpush1.msra.mxu0 0.0
  %76 = vmatprep.subr.mxu0 0.0
  %77 = vmatpush1.msra.mxu0 0.0
  %78 = vmatprep.subr.mxu0 0.0
  %79 = vmatpush1.msra.mxu0 0.0
  %80 = vmatprep.subr.mxu0 0.0
  %81 = vmatpush1.msra.mxu0 0.0
  %82 = vmatprep.subr.mxu0 0.0
  %83 = vmatpush1.msra.mxu0 0.0
  %84 = vmatprep.subr.mxu0 0.0
  %85 = vmatpush1.msra.mxu0 0.0
  %86 = vmatprep.subr.mxu0 0.0
  %87 = vmatpush1.msra.mxu0 0.0
  %88 = vmatprep.subr.mxu0 0.0
  %89 = vmatpush1.msra.mxu0 0.0
  %90 = vmatprep.subr.mxu0 0.0
  %91 = vmatpush1.msra.mxu0 0.0
  %92 = vmatprep.subr.mxu0 0.0
  %93 = vmatpush1.msra.mxu0 0.0
  %94 = vmatprep.subr.mxu0 0.0
  %95 = vmatpush1.msra.mxu0 0.0
  %96 = vmatprep.subr.mxu0 0.0
  %97 = vmatpush1.msra.mxu0 0.0
  %98 = vmatprep.subr.mxu0 0.0
  %99 = vmatpush1.msra.mxu0 0.0
  %100 = vmatprep.mubr.f32.mxu0 0.0
  %101 = vmatmul.mubr.f32.gmra.mrb[0].mxu0 %v34
  %v102 = vpop.f32.mrb[0].mxu0
  %v103 = vadd.f32 %v30, %v102
  %v104 = vpop.f32.mrb[0].mxu0
  %105 = vdwg.mxu0
  %106 = vst [vmem:[%s3] sm:$0x3] %v103
  // Predicated region
  $region14: #{att_head_forward.1} parent=0 // pred_check
    _
  $region15: #{att_head_forward.1} parent=0 // pred_check_branch
    %108 = sbr.rel (0) target = $region17
  $region16: #{att_head_forward.1} parent=0 // pred_region
    _
  $region17: #{att_head_forward.1} parent=0 // pred_fallthru
    _
  // Predicated region
  $region18: #{att_head_forward.1} parent=0 // pred_check
    _
  $region19: #{att_head_forward.1} parent=0 // pred_check_branch
    %110 = sbr.rel (0) target = $region21
  $region20: #{att_head_forward.1} parent=0 // pred_region
    _
  $region21: #{att_head_forward.1} parent=0 // pred_fallthru
    _

</llo_original>
